<compile_context>
chip_gen: v7x
topology: tpu7x:2x2x1
jax: 0.10.0
libtpu: 0.0.40
codegen_flags: <defaults>
</compile_context>

<pallas_src>
import functools

import jax
import jax.numpy as jnp
from jax.experimental import pallas as pl
from jax.experimental.pallas import tpu as pltpu


_LANES = 128
_ROW_ALIGN = 16                 # sublane alignment valid for f32 and bf16 packing
_TILE_R_MAX = 256               # max rows per block
_BLOCK_BYTE_BUDGET = 6 * 1024 * 1024   # ~6 MiB/block; 2x double-buffered fits all gens
_MAX_UNROLL_CHUNKS = 64         # static-unroll threshold for the per-tile chunk loop


def _accumulate_tile(x_ref, acc_ref, k, *, tile_k, true_k, apply_mask):
    """Add this (tile_r, tile_k) block's 128-lane partial sums into acc_ref (f32)."""
    rows = x_ref.shape[0]
    n_full = tile_k // _LANES
    rem = tile_k - n_full * _LANES

    def mask_chunk(chunk, lane_off, width):
        # (1, width) iota broadcast against the (rows, width) chunk.
        col = (jax.lax.broadcasted_iota(jnp.int32, (1, width), 1)
               + (k * tile_k + lane_off))
        return jnp.where(col < true_k, chunk, 0.0)

    if n_full > 0:
        if n_full <= _MAX_UNROLL_CHUNKS:
            partial = None
            for c in range(n_full):
                chunk = x_ref[:, c * _LANES:(c + 1) * _LANES].astype(jnp.float32)
                if apply_mask:
                    chunk = mask_chunk(chunk, c * _LANES, _LANES)
                partial = chunk if partial is None else partial + chunk
        else:
            def body(c, p):
                start = pl.multiple_of(c * _LANES, _LANES)
                chunk = x_ref[:, pl.ds(start, _LANES)].astype(jnp.float32)
                if apply_mask:
                    chunk = mask_chunk(chunk, c * _LANES, _LANES)
                return p + chunk
            partial = jax.lax.fori_loop(
                0, n_full, body, jnp.zeros((rows, _LANES), jnp.float32),
                unroll=8)
        acc_ref[...] += partial

    if rem:
        # Narrow tail (< 128 lanes): only occurs when tile_k == K (single K
        # step), so this one extra cross-lane reduce is negligible.
        chunk = x_ref[:, n_full * _LANES:tile_k].astype(jnp.float32)
        if apply_mask:
            chunk = mask_chunk(chunk, n_full * _LANES, rem)
        acc_ref[:, 0:1] += jnp.sum(chunk, axis=-1, keepdims=True)


def _mean_kernel(x_ref, o_ref, acc_ref, *, true_k, tile_k, mask_last):
    k = pl.program_id(1)
    nk = pl.num_programs(1)

    @pl.when(k == 0)
    def _():
        acc_ref[...] = jnp.zeros_like(acc_ref)

    if mask_last:
        # Only the final K step pays for the lane mask.
        @pl.when(k == nk - 1)
        def _():
            _accumulate_tile(x_ref, acc_ref, k, tile_k=tile_k, true_k=true_k,
                             apply_mask=True)

        @pl.when(k < nk - 1)
        def _():
            _accumulate_tile(x_ref, acc_ref, k, tile_k=tile_k, true_k=true_k,
                             apply_mask=False)
    else:
        _accumulate_tile(x_ref, acc_ref, k, tile_k=tile_k, true_k=true_k,
                         apply_mask=False)

    @pl.when(k == nk - 1)
    def _():
        # Single XLU cross-lane reduce + scale + cast, once per row tile.
        row_sum = jnp.sum(acc_ref[...], axis=-1, keepdims=True)
        o_ref[...] = (row_sum * (1.0 / true_k)).astype(o_ref.dtype)


def _round_up(v, m):
    return ((v + m - 1) // m) * m


def _choose_tiles(R, K, itemsize, block_byte_budget):
    # Row tile: full R when it fits, otherwise fixed 256-row blocks (the ragged
    # trailing row tile is handled by dropped out-of-bounds writes).
    tile_r = R if R <= _TILE_R_MAX else _TILE_R_MAX
    # Megacore (v7x: 2 TensorCores): ensure the "parallel" row axis has >= 2
    # tiles when R can be split on a sublane-aligned boundary. Harmless on 1-TC
    # chips (block byte budget below compensates via a larger tile_k).
    if tile_r == R and R >= 2 * _ROW_ALIGN:
        tile_r = _round_up(pl.cdiv(R, 2), _ROW_ALIGN)
    # K tile from the byte budget, coupled to tile_r and the dtype itemsize,
    # rounded down to a 128-lane multiple.
    per_row_elems = max(block_byte_budget // max(tile_r * itemsize, 1), _LANES)
    budget_k = (per_row_elems // _LANES) * _LANES
    tile_k = K if K <= budget_k else budget_k
    return tile_r, tile_k


def _pallas_mean_last_axis(x2d, *, block_byte_budget=_BLOCK_BYTE_BUDGET):
    """x2d: (R, K) -> (R, 1), mean over the last axis via a tiled Pallas kernel."""
    R, K = x2d.shape
    tile_r, tile_k = _choose_tiles(R, K, x2d.dtype.itemsize, block_byte_budget)
    mask_last = (K % tile_k) != 0
    grid = (pl.cdiv(R, tile_r), pl.cdiv(K, tile_k))

    kernel = functools.partial(_mean_kernel, true_k=K, tile_k=tile_k,
                               mask_last=mask_last)

    return pl.pallas_call(
        kernel,
        out_shape=jax.ShapeDtypeStruct((R, 1), x2d.dtype),
        grid_spec=pltpu.PrefetchScalarGridSpec(
            num_scalar_prefetch=0,
            grid=grid,
            in_specs=[pl.BlockSpec((tile_r, tile_k), lambda i, k: (i, k))],
            out_specs=pl.BlockSpec((tile_r, 1), lambda i, k: (i, 0)),
            scratch_shapes=[pltpu.VMEM((tile_r, _LANES), jnp.float32)],
        ),
        compiler_params=pltpu.CompilerParams(
            # Row tiles independent (v7x megacore); K axis carries the accumulator.
            dimension_semantics=("parallel", "arbitrary"),
            # ~2 x 6 MiB double-buffered input + 128 KiB scratch; explicit limit
            # so v5e's 16 MiB scoped default is never the limiter.
            vmem_limit_bytes=40 * 1024 * 1024,
        ),
    )(x2d)


class GAP:
    """JAX/Pallas equivalent of the PyTorch GAP module (mean over `dims`)."""

    def __init__(self, *dims, keepdim=True):
        self.dims = dims
        self.keepdim = keepdim

    def __call__(self, x):
        ndim = x.ndim
        red_dims = tuple(sorted(d % ndim for d in self.dims))
        if not red_dims:
            return x
        keep_dims = tuple(d for d in range(ndim) if d not in red_dims)

        # Bring reduced dims to the end and flatten to a (rows, K) slab. For the
        # common NCHW spatial GAP this transpose is the identity (no data
        # movement).
        # TODO(synk): for non-trailing reduction dims, express the original
        # layout via a 3-D grid (outer_keep, reduced, inner_keep) instead of an
        # extra XLA transpose pass over HBM.
        xt = jnp.transpose(x, keep_dims + red_dims)
        keep_shape = tuple(x.shape[d] for d in keep_dims)
        R = 1
        for s in keep_shape:
            R *= s
        K = xt.size // max(R, 1)
        x2d = xt.reshape(R, K)

        out2d = _pallas_mean_last_axis(x2d)  # (R, 1)

        if self.keepdim:
            out_shape = tuple(1 if d in red_dims else x.shape[d]
                              for d in range(ndim))
        else:
            out_shape = keep_shape
        return out2d.reshape(out_shape)


if __name__ == "__main__":
    key = jax.random.PRNGKey(0)
    x = jax.random.normal(key, (2, 4, 16, 16), dtype=jnp.float32)  # NCHW

    # Spatial global average pool (trailing reduction dims).
    gap = GAP(2, 3, keepdim=True)
    out = jax.block_until_ready(gap(x))
    ref = jnp.mean(x, axis=(2, 3), keepdims=True)
    assert out.shape == (2, 4, 1, 1), out.shape
    assert jnp.allclose(out, ref, atol=1e-5, rtol=1e-5), float(
        jnp.max(jnp.abs(out - ref)))

    # Non-trailing reduction dim, keepdim=False (exercises the transpose path
    # and the narrow-K tail reduce).
    gap2 = GAP(1, keepdim=False)
    out2 = jax.block_until_ready(gap2(x))
    ref2 = jnp.mean(x, axis=1, keepdims=False)
    assert out2.shape == ref2.shape, out2.shape
    assert jnp.allclose(out2, ref2, atol=1e-5, rtol=1e-5)

    # Multi-K-step accumulation + gated masked K-tail + ragged-R paths
    # (tiny block budget forces tiling at a small shape).
    xr = jax.random.normal(jax.random.PRNGKey(1), (300, 1000), jnp.float32)
    out3 = jax.block_until_ready(
        _pallas_mean_last_axis(xr, block_byte_budget=64 * 1024))
    ref3 = jnp.mean(xr, axis=1, keepdims=True)
    assert jnp.allclose(out3, ref3, atol=1e-5, rtol=1e-5), float(
        jnp.max(jnp.abs(out3 - ref3)))

    # bf16 input: dtype-aware tiling, f32 accumulation, megacore row split.
    xb = jax.random.normal(jax.random.PRNGKey(2), (4, 8, 14, 14), jnp.bfloat16)
    outb = jax.block_until_ready(GAP(2, 3)(xb))
    refb = jnp.mean(xb.astype(jnp.float32), axis=(2, 3), keepdims=True)
    assert jnp.allclose(outb.astype(jnp.float32), refb, atol=1e-2, rtol=1e-2)

    print("KERNEL_OK")
</pallas_src>

<mosaic_0001>
module attributes {stable_mosaic.version = 11 : i64} {
  func.func @_mean_kernel(%arg0: i32, %arg1: i32, %arg2: memref<8x256xf32, #tpu.memory_space<vmem>>, %arg3: memref<8x1xf32, #tpu.memory_space<vmem>>, %arg4: memref<8x128xf32, #tpu.memory_space<vmem>>) attributes {dimension_semantics = [#tpu.dimension_semantics<parallel>, #tpu.dimension_semantics<arbitrary>], iteration_bounds = array<i64: 1, 1>, scalar_prefetch = 0 : i64, scratch_operands = 1 : i64, tpu.core_type = #tpu.core_type<tc>, window_params = [{transform_indices = @transform_0, window_bounds = array<i64: 8, 256>}, {transform_indices = @transform_1, window_bounds = array<i64: 8, 1>}]} {
    %c0_i32 = arith.constant 0 : i32
    %0 = arith.cmpi eq, %arg1, %c0_i32 : i32
    %1 = arith.extui %0 : i1 to i32
    %c0_i32_0 = arith.constant 0 : i32
    %2 = arith.cmpi ne, %1, %c0_i32_0 : i32
    scf.if %2 {
      %cst = arith.constant 0.000000e+00 : f32
      %12 = vector.broadcast %cst : f32 to vector<8x128xf32>
      %c0_9 = arith.constant 0 : index
      %c0_10 = arith.constant 0 : index
      %13 = vector.load %arg4[%c0_9, %c0_10] : memref<8x128xf32, #tpu.memory_space<vmem>>, vector<8x128xf32>
      tpu.vector_store %arg4[%c0_9, %c0_10], %12 {strides = array<i32>} : memref<8x128xf32, #tpu.memory_space<vmem>>, vector<8x128xf32>,
    } else {
    }
    %c0 = arith.constant 0 : index
    %c0_1 = arith.constant 0 : index
    %3 = vector.load %arg2[%c0, %c0_1] : memref<8x256xf32, #tpu.memory_space<vmem>>, vector<8x128xf32>
    %c0_2 = arith.constant 0 : index
    %c128 = arith.constant 128 : index
    %4 = vector.load %arg2[%c0_2, %c128] : memref<8x256xf32, #tpu.memory_space<vmem>>, vector<8x128xf32>
    %5 = arith.addf %3, %4 : vector<8x128xf32>
    %c0_3 = arith.constant 0 : index
    %c0_4 = arith.constant 0 : index
    %6 = vector.load %arg4[%c0_3, %c0_4] : memref<8x128xf32, #tpu.memory_space<vmem>>, vector<8x128xf32>
    %7 = arith.addf %6, %5 : vector<8x128xf32>
    %c0_5 = arith.constant 0 : index
    %c0_6 = arith.constant 0 : index
    %8 = vector.load %arg4[%c0_5, %c0_6] : memref<8x128xf32, #tpu.memory_space<vmem>>, vector<8x128xf32>
    tpu.vector_store %arg4[%c0_5, %c0_6], %7 {strides = array<i32>} : memref<8x128xf32, #tpu.memory_space<vmem>>, vector<8x128xf32>,
    %c0_i32_7 = arith.constant 0 : i32
    %9 = arith.cmpi eq, %arg1, %c0_i32_7 : i32
    %10 = arith.extui %9 : i1 to i32
    %c0_i32_8 = arith.constant 0 : i32
    %11 = arith.cmpi ne, %10, %c0_i32_8 : i32
    scf.if %11 {
      %c0_9 = arith.constant 0 : index
      %c0_10 = arith.constant 0 : index
      %12 = vector.load %arg4[%c0_9, %c0_10] : memref<8x128xf32, #tpu.memory_space<vmem>>, vector<8x128xf32>
      %cst = arith.constant dense<0.000000e+00> : vector<8xf32>
      %13 = vector.multi_reduction <add>, %12, %cst [1] : vector<8x128xf32> to vector<8xf32>
      %14 = vector.shape_cast %13 : vector<8xf32> to vector<8x1xf32>
      %cst_11 = arith.constant 3.906250e-03 : f32
      %15 = vector.broadcast %cst_11 : f32 to vector<8x1xf32>
      %16 = arith.mulf %14, %15 : vector<8x1xf32>
      %c0_12 = arith.constant 0 : index
      %c0_13 = arith.constant 0 : index
      %17 = vector.load %arg3[%c0_12, %c0_13] : memref<8x1xf32, #tpu.memory_space<vmem>>, vector<8x1xf32>
      tpu.vector_store %arg3[%c0_12, %c0_13], %16 {strides = array<i32>} : memref<8x1xf32, #tpu.memory_space<vmem>>, vector<8x1xf32>,
    } else {
    }
    return
  }
  func.func @transform_0(%arg0: i32, %arg1: i32) -> (i32, i32) {
    %c0_i32 = arith.constant 0 : i32
    return %arg0, %arg1 : i32, i32
  }
  func.func @transform_1(%arg0: i32, %arg1: i32) -> (i32, i32) {
    %c0_i32 = arith.constant 0 : i32
    %c0_i32_0 = arith.constant 0 : i32
    return %arg0, %c0_i32 : i32, i32
  }
}

</mosaic_0001>

<llo_original>
// kernel: tpu_custom_call.1
$region0: #{tpu_custom_call.1}
  #allocation0 [shape = 'u32[]', space=smem, size = 0x4, offset = 0x4, fixed_abs, tag = 'smem constant byte address 0x4 - core index']
  #allocation1 [shape = 'u32[144,128]{1,0:T(1,128)}', space=vmem, size = 0x12000, scoped, tag = 'internal scratch']
  #allocation2 [shape = 'f32[8,128]{1,0:T(8,128)}', space=vmem, size = 0x1000, scoped, tag = 'scratch operand']
  %s0 = inlined_call_operand.hbm [shape: f32[8,256], index: 0, kind: input, shape index: {}]
  %s1 = inlined_call_operand.vmem [shape: f32[8,1], index: 1, kind: output, shape index: {}]
  %s2 = sld [smem:[#allocation0]]
  $region26: #{tpu_custom_call.1} parent=0
    _
  %s4 = ssub.s32 1, %s2
  %s5 = scalar_select 0, %s4, %s2
  $region1: #{tpu_custom_call.1} parent=0
    #allocation3 [shape = 'u8[8192]{0}', space=vmem, size = 0x2000, scoped, tag = 'input window, operand 0, single buffered']
    #allocation4 [shape = 's32[1]{0}', space=sflag, size = 0x4, scoped, tag = 'scoped memory for tpu_custom_call.1']
    %6 = vsyncpa [#allocation4], 0
    // Predicated region
    $region2: #{tpu_custom_call.1} parent=1 // pred_check
      _
    $region3: #{tpu_custom_call.1} parent=1 // pred_check_branch
      %8 = sbr.rel (0) target = $region5
    $region4: #{tpu_custom_call.1} parent=1 // pred_region
      %s10 = ssub.s32 256, 256
      %11 = vsyncadd [#allocation4], %s10
      %s13 = sshll.u32 [#allocation3], 4
      %s14 = int_to_ptr.vmem [resolvable:$true] %s13
      %16 = dma.hbm_to_vmem [thread:$0]  %s0, 256, %s14, [#allocation4]
    $region5: #{tpu_custom_call.1} parent=1 // pred_fallthru
      _
    // Predicated region
    $region6: #{tpu_custom_call.1} parent=1 // pred_check
      _
    $region7: #{tpu_custom_call.1} parent=1 // pred_check_branch
      %18 = sbr.rel (0) target = $region9
    $region8: #{tpu_custom_call.1} parent=1 // pred_region
      %19 = dma.done [#allocation4], 256
    $region9: #{tpu_custom_call.1} parent=1 // pred_fallthru
      _
    %p20 = scmp.eq.s32.totalorder 0, 0
    // Predicated region
    $region10: #{tpu_custom_call.1} parent=1 // pred_check
      %p21 = pneg %p20
    $region11: #{tpu_custom_call.1} parent=1 // pred_check_branch
      %23 = sbr.rel (%p21) target = $region13
    $region12: #{tpu_custom_call.1} parent=1 // pred_region
      %24 = vst [vmem:[#allocation2] sm:$0xff] 0.0
    $region13: #{tpu_custom_call.1} parent=1 // pred_fallthru
      _
    %v25 = vld [vmem:[#allocation3] sm:$0xff]
    %v26 = vld [vmem:[#allocation3 + $0x8] sm:$0xff]
    %v27 = vadd.f32 %v25, %v26
    %v28 = vld [vmem:[#allocation2] sm:$0xff]
    %v29 = vadd.f32 %v28, %v27
    %30 = vst [vmem:[#allocation2] sm:$0xff] %v29
    // Predicated region
    $region14: #{tpu_custom_call.1} parent=1 // pred_check
      %p31 = pneg %p20
    $region15: #{tpu_custom_call.1} parent=1 // pred_check_branch
      %33 = sbr.rel (%p31) target = $region17
    $region16: #{tpu_custom_call.1} parent=1 // pred_region
      %v34 = vld [vmem:[#allocation2] sm:$0xff]
      %35 = vadd.xlane.f32.xlu0 %v34
      %v36 = vpop.xlane.xlu0 %35
      %v37 = vmul.f32 %v36, 0.00390625
      %vm38 = vcmask 7168
      %39 = vst.msk [vmem:[%s1] sm:$0xff] %vm38, %v37
    $region17: #{tpu_custom_call.1} parent=1 // pred_fallthru
      _
    // Predicated region
    $region18: #{tpu_custom_call.1} parent=1 // pred_check
      _
    $region19: #{tpu_custom_call.1} parent=1 // pred_check_branch
      %41 = sbr.rel (0) target = $region21
    $region20: #{tpu_custom_call.1} parent=1 // pred_region
      _
    $region21: #{tpu_custom_call.1} parent=1 // pred_fallthru
      _
    // Predicated region
    $region22: #{tpu_custom_call.1} parent=1 // pred_check
      _
    $region23: #{tpu_custom_call.1} parent=1 // pred_check_branch
      %43 = sbr.rel (0) target = $region25
    $region24: #{tpu_custom_call.1} parent=1 // pred_region
      _
    $region25: #{tpu_custom_call.1} parent=1 // pred_fallthru
      _
    %44 = vsyncpa [#allocation4], 1

</llo_original>
